<compile_context>
chip_gen: v5e
topology: v5e:2x2
jax: 0.10.0
libtpu: 0.0.40
codegen_flags: <defaults>
</compile_context>

<pallas_src>
import jax
import jax.numpy as jnp
from jax import lax
from jax.experimental import pallas as pl
from jax.experimental.pallas import tpu as pltpu

EPS = 1e-12  # torch F.normalize default eps


def _l2_normalize_kernel(x_ref, o_ref):
    # Tile: (TILE_B, D); reduction along the lane (last) axis, rows independent.
    x = x_ref[...]
    xf = x.astype(jnp.float32)
    sumsq = jnp.sum(xf * xf, axis=-1, keepdims=True)               # (TILE_B, 1)
    # 1 / max(sqrt(s), eps)  ==  min(rsqrt(s), 1/eps)   (s == 0 -> 1/eps as well)
    inv = jnp.minimum(lax.rsqrt(sumsq), jnp.float32(1.0 / EPS))    # narrow EUP op
    # Multiply the raw-dtype tile so the full-tile f32 upcast is dead after the
    # reduction (matters for sub-32-bit inputs on v7x's 64 MiB VMEM).
    o_ref[...] = (x * inv).astype(o_ref.dtype)


def _budgets():
    """Generation-aware tile / VMEM budgets."""
    target_tile = 4 << 20     # ~4 MiB input tile: past the efficiency knee on v5e/v6e
    tile_budget = 32 << 20    # dbl-buffered in+out + f32 temps must fit here
    vmem_limit = 48 << 20     # explicit scoped-VMEM override (v5e default is 16 MiB)
    try:
        cap = int(pltpu.get_tpu_info().vmem_capacity_bytes)
        if cap <= (64 << 20):
            # v7x-class: HBM ~3.2 TB/s makes a 4 MiB step only ~2.5 us, so the
            # ~0.35 us per-step overhead bites; use bigger tiles but respect 64 MiB.
            target_tile = 8 << 20
            vmem_limit = min(48 << 20, cap - (8 << 20))
            tile_budget = vmem_limit - (4 << 20)
    except Exception:
        pass  # fall back to conservative defaults (valid on all generations)
    return target_tile, tile_budget, vmem_limit


def _choose_tile_b(B, D, itemsize, target_bytes, budget_bytes):
    """Row-tile size: ~target bytes per input tile, VMEM-safe, TC-balanced grid."""
    row_bytes = max(1, D * itemsize)
    # double-buffered in + out tiles, plus ~2 full-tile f32 temporaries
    per_row_vmem = D * (4 * itemsize + 8)
    tile_b = min(target_bytes // row_bytes, budget_bytes // per_row_vmem)
    tile_b = max(8, (tile_b // 8) * 8)                  # sublane multiple
    b_ceil = ((B + 7) // 8) * 8
    tile_b = min(tile_b, b_ceil)
    # Prefer an even step count >= 4 (>= 2 per TensorCore on dual-TC v7x) when it
    # costs little; otherwise the largest tile giving >= 2 steps; otherwise 1 tile.
    best_even = None
    best_two = None
    for cand in range(tile_b, 7, -8):
        steps = -(-B // cand)
        if steps >= 2 and best_two is None:
            best_two = cand
        if steps >= 4 and steps % 2 == 0:
            best_even = cand
            break
    if best_even is not None:
        return best_even
    if best_two is not None:
        return best_two
    return tile_b


def _normalize_2d(x: jax.Array, *, tile_b=None) -> jax.Array:
    """L2-normalize each row of a [B, D] array (reduction over the last axis)."""
    B, D = x.shape
    itemsize = jnp.dtype(x.dtype).itemsize
    target_tile, tile_budget, vmem_limit = _budgets()
    if tile_b is None:
        tile_b = _choose_tile_b(B, D, itemsize, target_tile, tile_budget)
    n_tiles = pl.cdiv(B, tile_b)  # ragged last block handled by Pallas masking

    # TODO(synk): for extremely wide D where even an 8-row tile exceeds the VMEM
    # budget, add a feature-axis ('arbitrary') tiling fallback that accumulates
    # sumsq and then rescales; not needed for this module's feature sizes.

    return pl.pallas_call(
        _l2_normalize_kernel,
        out_shape=jax.ShapeDtypeStruct((B, D), x.dtype),
        grid_spec=pltpu.PrefetchScalarGridSpec(
            num_scalar_prefetch=0,
            grid=(n_tiles,),
            in_specs=[pl.BlockSpec((tile_b, D), lambda i: (i, 0))],
            out_specs=pl.BlockSpec((tile_b, D), lambda i: (i, 0)),
        ),
        compiler_params=pltpu.CompilerParams(
            dimension_semantics=("parallel",),
            vmem_limit_bytes=vmem_limit,
        ),
    )(x)


def normalize(x: jax.Array, *, tile_b=None) -> jax.Array:
    """torch.nn.functional.normalize defaults: p=2, dim=1, eps=1e-12."""
    assert x.ndim >= 2, "F.normalize(dim=1) requires rank >= 2"
    if x.ndim == 2:
        return _normalize_2d(x, tile_b=tile_b)
    # ND (e.g. NCHW): dim=1 is the channel axis. Move it to the lane (last) axis
    # so the reduction is lane-dense, flatten the rest to rows, run the 2D
    # kernel, and undo the layout (plain-XLA glue transposes).
    xt = jnp.moveaxis(x, 1, -1)
    lead = xt.shape[:-1]
    out = _normalize_2d(xt.reshape((-1, xt.shape[-1])), tile_b=tile_b)
    return jnp.moveaxis(out.reshape(lead + (xt.shape[-1],)), -1, 1)


if __name__ == "__main__":
    key = jax.random.PRNGKey(0)

    def ref_normalize(x, dim=1):
        n = jnp.sqrt(jnp.sum(x * x, axis=dim, keepdims=True))
        return x / jnp.maximum(n, EPS)

    k1, k2, k3 = jax.random.split(key, 3)

    # [B, D] feature vectors (the angle-estimator use case).
    x1 = jax.random.normal(k1, (64, 256), dtype=jnp.float32)
    y1 = jax.block_until_ready(normalize(x1))
    assert jnp.allclose(y1, ref_normalize(x1), atol=1e-5, rtol=1e-5), "mismatch (64,256)"

    # Non-divisible batch + non-128-multiple feature dim (ragged last block path).
    x2 = jax.random.normal(k2, (10, 96), dtype=jnp.float32)
    y2 = jax.block_until_ready(normalize(x2))
    assert jnp.allclose(y2, ref_normalize(x2), atol=1e-5, rtol=1e-5), "mismatch (10,96)"

    # NCHW input: F.normalize default dim=1 is the channel axis.
    x3 = jax.random.normal(k3, (2, 4, 16, 16), dtype=jnp.float32)
    y3 = jax.block_until_ready(normalize(x3))
    assert jnp.allclose(y3, ref_normalize(x3, dim=1), atol=1e-5, rtol=1e-5), "mismatch NCHW"

    print("KERNEL_OK")
</pallas_src>

<mosaic_0001>
module attributes {stable_mosaic.version = 11 : i64} {
  func.func @_l2_normalize_kernel(%arg0: i32, %arg1: memref<16x256xf32, #tpu.memory_space<vmem>>, %arg2: memref<16x256xf32, #tpu.memory_space<vmem>>) attributes {dimension_semantics = [#tpu.dimension_semantics<parallel>], iteration_bounds = array<i64: 4>, scalar_prefetch = 0 : i64, scratch_operands = 0 : i64, tpu.core_type = #tpu.core_type<tc>, window_params = [{transform_indices = @transform_0, window_bounds = array<i64: 16, 256>}, {transform_indices = @transform_1, window_bounds = array<i64: 16, 256>}]} {
    %c0 = arith.constant 0 : index
    %c0_0 = arith.constant 0 : index
    %0 = vector.load %arg1[%c0, %c0_0] : memref<16x256xf32, #tpu.memory_space<vmem>>, vector<16x256xf32>
    %1 = arith.mulf %0, %0 : vector<16x256xf32>
    %cst = arith.constant dense<0.000000e+00> : vector<16xf32>
    %2 = vector.multi_reduction <add>, %1, %cst [1] : vector<16x256xf32> to vector<16xf32>
    %3 = vector.shape_cast %2 : vector<16xf32> to vector<16x1xf32>
    %4 = math.rsqrt %3 : vector<16x1xf32>
    %cst_1 = arith.constant 9.99999995E+11 : f32
    %5 = vector.broadcast %cst_1 : f32 to vector<16x1xf32>
    %6 = arith.minimumf %4, %5 : vector<16x1xf32>
    %7 = vector.broadcast %6 : vector<16x1xf32> to vector<16x256xf32>
    %8 = arith.mulf %0, %7 : vector<16x256xf32>
    %c0_2 = arith.constant 0 : index
    %c0_3 = arith.constant 0 : index
    %9 = vector.load %arg2[%c0_2, %c0_3] : memref<16x256xf32, #tpu.memory_space<vmem>>, vector<16x256xf32>
    tpu.vector_store %arg2[%c0_2, %c0_3], %8 {strides = array<i32>} : memref<16x256xf32, #tpu.memory_space<vmem>>, vector<16x256xf32>,
    return
  }
  func.func @transform_0(%arg0: i32) -> (i32, i32) {
    %c0_i32 = arith.constant 0 : i32
    %c0_i32_0 = arith.constant 0 : i32
    return %arg0, %c0_i32 : i32, i32
  }
  func.func @transform_1(%arg0: i32) -> (i32, i32) {
    %c0_i32 = arith.constant 0 : i32
    %c0_i32_0 = arith.constant 0 : i32
    return %arg0, %c0_i32 : i32, i32
  }
}

</mosaic_0001>

<llo_original>
// kernel: tpu_custom_call.1
$region0: #{tpu_custom_call.1}
  #allocation0 [shape = 'u32[]', space=smem, size = 0x4, offset = 0x4, fixed_abs, tag = 'smem constant byte address 0x4 - core index']
  #allocation1 [shape = 'u32[72,128]{1,0:T(1,128)}', space=vmem, size = 0x9000, scoped, tag = 'internal scratch']
  %s0 = inlined_call_operand.hbm [shape: f32[64,256], index: 0, kind: input, shape index: {}]
  %s1 = inlined_call_operand.hbm [shape: f32[64,256], index: 1, kind: output, shape index: {}]
  %s2 = sld [smem:[#allocation0]]
  $region41: #{tpu_custom_call.1} parent=0
    _
  %s4 = ssub.s32 1, %s2
  %s5 = scalar_select 0, %s4, %s2
  $region1: #{tpu_custom_call.1} parent=0
    #allocation2 [shape = 'u8[32768]{0}', space=vmem, size = 0x8000, scoped, tag = 'input window, operand 0']
    #allocation3 [shape = 's32[2]{0}', space=sflag, size = 0x8, scoped, tag = 'scoped memory for tpu_custom_call.1']
    #allocation4 [shape = 's32[2]{0}', space=sflag, size = 0x8, scoped, tag = 'scoped memory for tpu_custom_call.1']
    #allocation5 [shape = 'u8[32768]{0}', space=vmem, size = 0x8000, scoped, tag = 'output window, operand 0']
    %6 = vsyncpa [#allocation3], 0
    %s7 = scalar_lea.sflag [#allocation3], 1
    %8 = vsyncpa %s7, 0
    %9 = vsyncpa [#allocation4], 0
    %s10 = scalar_lea.sflag [#allocation4], 1
    %11 = vsyncpa %s10, 0
    loop: start=0, step=1, limit=6
    $region2: #{tpu_custom_call.1} parent=1 // loop_pre_header
      _
    $region3: #{tpu_custom_call.1} parent=1 // loop_header
      %s13 = sphi 0, %s17
      %p14 = scmp.ge.s32.totalorder %s13, 6
      %s23 = sphi 0, %s25
      %s26 = sphi 0, %s23
      %s27 = sphi 0, %s26
      %s43 = sphi 0, %s27
      %s49 = sphi 0, %s51
      %s52 = sphi 0, %s49
      %s53 = sphi 0, %s52
      %s69 = sphi 0, %s53
    $region4: #{tpu_custom_call.1} parent=1 // loop_header_branch
      %16 = sbr.rel (%p14) target = $region8
    $region5: #{tpu_custom_call.1} parent=1 // loop_body
      %s18 = ssub.s32 %s13, 1
      %s19 = ssub.s32 %s13, 2
      %s20 = sadd.s32 %s13, 1
      %s21 = ssub.s32 %s13, %s20
      %p22 = scmp.eq.s32.totalorder %s21, 0
      %s24 = sadd.s32 %s23, 1
      %s25 = scalar_select %p22, %s23, %s24
      %p28 = pneg %p22
      %p29 = scmp.eq.s32.totalorder %s13, 3
      %p30 = por %p28, %p29
      %p31 = scmp.ne.s32.totalorder %s23, %s26
      %p32 = scmp.eq.s32.totalorder %s13, 0
      %p33 = por %p31, %p32
      %p34 = scmp.ne.s32.totalorder %s23, %s26
      %p35 = scmp.eq.s32.totalorder %s18, 3
      %p36 = por %p34, %p35
      %p37 = scmp.ne.s32.totalorder %s26, %s27
      %p38 = scmp.eq.s32.totalorder %s18, 0
      %p39 = por %p37, %p38
      %p40 = scmp.ne.s32.totalorder %s26, %s27
      %p41 = scmp.eq.s32.totalorder %s19, 3
      %p42 = por %p40, %p41
      %p44 = scmp.ne.s32.totalorder %s27, %s43
      %p45 = scmp.eq.s32.totalorder %s19, 0
      %p46 = por %p44, %p45
      %s47 = ssub.s32 %s13, %s20
      %p48 = scmp.eq.s32.totalorder %s47, 0
      %s50 = sadd.s32 %s49, 1
      %s51 = scalar_select %p48, %s49, %s50
      %p54 = pneg %p48
      %p55 = scmp.eq.s32.totalorder %s13, 3
      %p56 = por %p54, %p55
      %p57 = scmp.ne.s32.totalorder %s49, %s52
      %p58 = scmp.eq.s32.totalorder %s13, 0
      %p59 = por %p57, %p58
      %p60 = scmp.ne.s32.totalorder %s49, %s52
      %p61 = scmp.eq.s32.totalorder %s18, 3
      %p62 = por %p60, %p61
      %p63 = scmp.ne.s32.totalorder %s52, %s53
      %p64 = scmp.eq.s32.totalorder %s18, 0
      %p65 = por %p63, %p64
      %p66 = scmp.ne.s32.totalorder %s52, %s53
      %p67 = scmp.eq.s32.totalorder %s19, 3
      %p68 = por %p66, %p67
      %p70 = scmp.ne.s32.totalorder %s53, %s69
      %p71 = scmp.eq.s32.totalorder %s19, 0
      %p72 = por %p70, %p71
      %p73 = scmp.le.s32.totalorder 1, %s13
      %p74 = scmp.lt.s32.totalorder %s13, 5
      %p75 = pnand %p73, %p74
      %p76 = pneg %p75
      // Predicated region
      $region9: #{tpu_custom_call.1} parent=5 // pred_check
        _
      $region10: #{tpu_custom_call.1} parent=5 // pred_check_branch
        %78 = sbr.rel (%p75) target = $region12
      $region11: #{tpu_custom_call.1} parent=5 // pred_region
        %s79 = ssub.s32 %s13, 1
      $region12: #{tpu_custom_call.1} parent=5 // pred_fallthru
        _
      %p80 = scmp.lt.s32.totalorder %s13, 4
      // Predicated region
      $region13: #{tpu_custom_call.1} parent=5 // pred_check
        %p81 = pneg %p80
      $region14: #{tpu_custom_call.1} parent=5 // pred_check_branch
        %83 = sbr.rel (%p81) target = $region16
      $region15: #{tpu_custom_call.1} parent=5 // pred_region
        // Predicated region
        $region17: #{tpu_custom_call.1} parent=15 // pred_check
          %p84 = pneg %p33
        $region18: #{tpu_custom_call.1} parent=15 // pred_check_branch
          %86 = sbr.rel (%p84) target = $region20
        $region19: #{tpu_custom_call.1} parent=15 // pred_region
          %s87 = sand.u32 %s23, 1
          %s88 = scalar_lea.sflag [#allocation3], %s87
          %s89 = sand.u32 %s23, 1
          %s90 = smul.addr %s89, 32
          %s91 = scalar_lea.vmem [#allocation2], %s90
          %s92 = smul.u32 2, %s13
          %94 = vsyncadd %s88, 0
          %s95 = smul.addr %s92, 2
          %s96 = smul.addr %s95, 8
          %s97 = scalar_lea.hbm %s0, %s96
          %s98 = sshll.u32 %s97, 4
          %s99 = int_to_ptr.hbm [resolvable:$true] %s98
          %s100 = sshll.u32 %s91, 4
          %s101 = int_to_ptr.vmem [resolvable:$true] %s100
          %106 = dma.hbm_to_vmem [thread:$0]  %s99, 512, %s101, %s88, 256, 256, 16
        $region20: #{tpu_custom_call.1} parent=15 // pred_fallthru
          _
      $region16: #{tpu_custom_call.1} parent=5 // pred_fallthru
        _
      %p107 = scmp.le.s32.totalorder 1, %s13
      %p108 = scmp.lt.s32.totalorder %s13, 5
      %p109 = pnand %p107, %p108
      %p110 = pneg %p109
      // Predicated region
      $region21: #{tpu_custom_call.1} parent=5 // pred_check
        _
      $region22: #{tpu_custom_call.1} parent=5 // pred_check_branch
        %112 = sbr.rel (%p109) target = $region24
      $region23: #{tpu_custom_call.1} parent=5 // pred_region
        %s113 = ssub.s32 %s13, 1
        %s114 = sand.u32 %s26, 1
        %s115 = scalar_lea.sflag [#allocation3], %s114
        %s116 = sand.u32 %s26, 1
        %s117 = smul.addr %s116, 32
        %s118 = scalar_lea.vmem [#allocation2], %s117
        // Predicated region
        $region25: #{tpu_custom_call.1} parent=23 // pred_check
          %p119 = pneg %p39
        $region26: #{tpu_custom_call.1} parent=23 // pred_check_branch
          %121 = sbr.rel (%p119) target = $region28
        $region27: #{tpu_custom_call.1} parent=23 // pred_region
          %123 = dma.done %s115, 512
        $region28: #{tpu_custom_call.1} parent=23 // pred_fallthru
          _
        %s124 = sand.u32 %s26, 1
        %s125 = scalar_lea.sflag [#allocation3], %s124
        %s126 = sand.u32 %s26, 1
        %s127 = smul.addr %s126, 32
        %s128 = scalar_lea.vmem [#allocation2], %s127
        %p129 = pneg %p39
        %p130 = pneg %p36
        %p131 = pneg %p65
        %p132 = pneg %p62
        %s133 = sand.u32 %s52, 1
        %s134 = scalar_lea.sflag [#allocation4], %s133
        %s135 = sand.u32 %s52, 1
        %s136 = smul.addr %s135, 32
        %s137 = scalar_lea.vmem [#allocation5], %s136
        %s138 = smul.u32 2, %s18
        %s139 = smul.u32 2, %s18
        %v140 = vld [vmem:[%s118] sm:$0xff]
        %v141 = vld [vmem:[%s118 + $0x8] sm:$0xff]
        %v142 = vld [vmem:[%s118 + $0x10] sm:$0xff]
        %v143 = vld [vmem:[%s118 + $0x18] sm:$0xff]
        %v144 = vmul.f32 %v140, %v140
        %v145 = vmul.f32 %v141, %v141
        %v146 = vmul.f32 %v142, %v142
        %v147 = vmul.f32 %v143, %v143
        %v148 = vadd.f32 %v144, %v145
        %149 = vadd.xlane.f32.xlu0 %v148
        %v150 = vpop.xlane.xlu0 %149
        %v151 = vadd.f32 %v146, %v147
        %152 = vadd.xlane.f32.xlu0 %v151
        %v153 = vpop.xlane.xlu0 %152
        %v154 = vrsqrt.pop %v150
        %v155 = vmul.f32 %v154, %v150
        %v156 = vmul.f32 %v155, %v154
        %v157 = vmul.f32 0.5, %v156
        %v158 = vsub.f32 1.5, %v157
        %v159 = vmul.f32 %v154, %v158
        %vm160 = vweird.f32 %v150
        %vm161 = vweird.f32 %v154
        %vm162 = vmor %vm160, %vm161
        %v163 = vsel %vm162, %v154, %v159
        %v164 = vrsqrt.pop %v153
        %v165 = vmul.f32 %v164, %v153
        %v166 = vmul.f32 %v165, %v164
        %v167 = vmul.f32 0.5, %v166
        %v168 = vsub.f32 1.5, %v167
        %v169 = vmul.f32 %v164, %v168
        %vm170 = vweird.f32 %v153
        %vm171 = vweird.f32 %v164
        %vm172 = vmor %vm170, %vm171
        %v173 = vsel %vm172, %v164, %v169
        %v174 = vmin.f32 %v163, 1e+12
        %v175 = vmin.f32 %v173, 1e+12
        %v176 = vmul.f32 %v140, %v174
        %v177 = vmul.f32 %v141, %v174
        %v178 = vmul.f32 %v142, %v175
        %v179 = vmul.f32 %v143, %v175
        %180 = vst [vmem:[%s137] sm:$0xff] %v176
        %181 = vst [vmem:[%s137 + $0x8] sm:$0xff] %v177
        %182 = vst [vmem:[%s137 + $0x10] sm:$0xff] %v178
        %183 = vst [vmem:[%s137 + $0x18] sm:$0xff] %v179
        %s184 = sand.u32 %s52, 1
        %s185 = scalar_lea.sflag [#allocation4], %s184
        %s186 = sand.u32 %s52, 1
        %s187 = smul.addr %s186, 32
        %s188 = scalar_lea.vmem [#allocation5], %s187
        // Predicated region
        $region29: #{tpu_custom_call.1} parent=23 // pred_check
          %p189 = pneg %p62
        $region30: #{tpu_custom_call.1} parent=23 // pred_check_branch
          %191 = sbr.rel (%p189) target = $region32
        $region31: #{tpu_custom_call.1} parent=23 // pred_region
          %s192 = smul.u32 2, %s18
          %194 = vsyncadd %s185, 0
          %s195 = smul.addr %s192, 2
          %s196 = smul.addr %s195, 8
          %s197 = scalar_lea.hbm %s1, %s196
          %s198 = sshll.u32 %s188, 4
          %s199 = int_to_ptr.vmem [resolvable:$true] %s198
          %s200 = sshll.u32 %s197, 4
          %s201 = int_to_ptr.hbm [resolvable:$true] %s200
          %206 = dma.vmem_to_hbm [thread:$0]  %s199, 512, %s201, %s185, 256, 256, 16
        $region32: #{tpu_custom_call.1} parent=23 // pred_fallthru
          _
      $region24: #{tpu_custom_call.1} parent=5 // pred_fallthru
        _
      %p207 = scmp.le.s32.totalorder 2, %s13
      // Predicated region
      $region33: #{tpu_custom_call.1} parent=5 // pred_check
        %p208 = pneg %p207
      $region34: #{tpu_custom_call.1} parent=5 // pred_check_branch
        %210 = sbr.rel (%p208) target = $region36
      $region35: #{tpu_custom_call.1} parent=5 // pred_region
        %s211 = ssub.s32 %s13, 2
        // Predicated region
        $region37: #{tpu_custom_call.1} parent=35 // pred_check
          %p212 = pneg %p68
        $region38: #{tpu_custom_call.1} parent=35 // pred_check_branch
          %214 = sbr.rel (%p212) target = $region40
        $region39: #{tpu_custom_call.1} parent=35 // pred_region
          %s215 = sand.u32 %s53, 1
          %s216 = scalar_lea.sflag [#allocation4], %s215
          %s217 = sand.u32 %s53, 1
          %s218 = smul.addr %s217, 32
          %s219 = scalar_lea.vmem [#allocation5], %s218
          %221 = dma.done %s216, 512
        $region40: #{tpu_custom_call.1} parent=35 // pred_fallthru
          _
      $region36: #{tpu_custom_call.1} parent=5 // pred_fallthru
        _
    $region6: #{tpu_custom_call.1} parent=1 // loop_footer
      %s17 = sadd.s32 1, %s13
    $region7: #{tpu_custom_call.1} parent=1 // loop_footer_branch
      %12 = sbr.rel target = $region3
    $region8: #{tpu_custom_call.1} parent=1 // loop_exit
      _
    %222 = vsyncpa [#allocation3], 1
    %s223 = scalar_lea.sflag [#allocation3], 1
    %224 = vsyncpa %s223, 1
    %225 = vsyncpa [#allocation4], 1
    %s226 = scalar_lea.sflag [#allocation4], 1
    %227 = vsyncpa %s226, 1

</llo_original>
